<compile_context>
chip_gen: v5e
topology: v5e:2x2
jax: 0.10.0
libtpu: 0.0.40
codegen_flags: <defaults>
</compile_context>

<pallas_src>
import jax
import jax.numpy as jnp
from jax.experimental import pallas as pl
from jax.experimental.pallas import tpu as pltpu


# ------------------------------ small helpers -------------------------------


def _round_up(n, m):
    return ((n + m - 1) // m) * m


def _pad_to(a, shape):
    pads = [(0, t - s) for s, t in zip(a.shape, shape)]
    if all(p == (0, 0) for p in pads):
        return a
    return jnp.pad(a, pads)


# ------------------------------ Pallas kernels -------------------------------


def _resnet_block_kernel_shortcut(x_ref, w0_ref, b0_ref, w1_ref, b1_ref,
                                  ws_ref, o_ref):
    """relu -> fc_0 -> relu -> fc_1, plus linear shortcut, residual add."""
    w_dtype = w0_ref.dtype
    x_f32 = x_ref[...].astype(jnp.float32)

    # net = fc_0(relu(x))
    h = jnp.maximum(x_f32, 0.0).astype(w_dtype)
    net = jnp.dot(h, w0_ref[...], preferred_element_type=jnp.float32)
    net = net + b0_ref[0:1, :]

    # dx = fc_1(relu(net))
    h2 = jnp.maximum(net, 0.0).astype(w_dtype)
    dx = jnp.dot(h2, w1_ref[...], preferred_element_type=jnp.float32)
    dx = dx + b1_ref[0:1, :]

    # x_s = shortcut(x)  (no bias)
    x_s = jnp.dot(x_f32.astype(w_dtype), ws_ref[...],
                  preferred_element_type=jnp.float32)

    o_ref[...] = (x_s + dx).astype(o_ref.dtype)


def _resnet_block_kernel_identity(x_ref, w0_ref, b0_ref, w1_ref, b1_ref, o_ref):
    """Same as above but shortcut is identity (size_in == size_out)."""
    w_dtype = w0_ref.dtype
    x_f32 = x_ref[...].astype(jnp.float32)

    h = jnp.maximum(x_f32, 0.0).astype(w_dtype)
    net = jnp.dot(h, w0_ref[...], preferred_element_type=jnp.float32)
    net = net + b0_ref[0:1, :]

    h2 = jnp.maximum(net, 0.0).astype(w_dtype)
    dx = jnp.dot(h2, w1_ref[...], preferred_element_type=jnp.float32)
    dx = dx + b1_ref[0:1, :]

    o_ref[...] = (x_f32 + dx).astype(o_ref.dtype)


# ------------------------------- host wrapper --------------------------------


def resnet_block_fc_pallas(x, params, *, tm=2048):
    """Apply the fully-connected resnet block via a single fused Pallas call.

    x:      (N, size_in) float array (any N).
    params: dict produced by `make_resnet_block_params` / `init_resnet_block_fc`:
            'w0' (size_in, h_p) weight-dtype, 'b0' (8, h_p) f32,
            'w1' (h_p, size_out) weight-dtype, 'b1' (8, size_out) f32,
            optional 'ws' (size_in, size_out) weight-dtype (linear shortcut).
    tm:     target row tile.  Rounded to a multiple of 16 (bf16 sublane
            packing) and shrunk so the grid has >= 2 steps when the batch is
            large enough (keeps both v7x TensorCores busy).
    """
    N, size_in = x.shape
    w0 = params["w0"]
    b0 = params["b0"]
    w1 = params["w1"]
    b1 = params["b1"]
    ws = params.get("ws", None)
    h_p = w0.shape[1]
    size_out = w1.shape[1]
    assert w0.shape[0] == size_in, "w0 first dim must equal size_in"
    if ws is None:
        assert size_in == size_out, "identity shortcut requires size_in == size_out"

    # --- row tiling: big tiles, but keep >= 2 grid steps for megacore -------
    row_mult = 16  # bf16 sublane packing minimum (also fine for f32)
    tm_cap = max(row_mult, _round_up(tm, row_mult))
    tm_half = _round_up(pl.cdiv(N, 2), row_mult)
    tm_eff = max(row_mult, min(tm_cap, tm_half))
    grid = (pl.cdiv(N, tm_eff),)

    in_specs = [
        pl.BlockSpec((tm_eff, size_in), lambda i: (i, 0)),   # x rows
        pl.BlockSpec((size_in, h_p), lambda i: (0, 0)),      # fc_0 weight^T (resident)
        pl.BlockSpec((8, h_p), lambda i: (0, 0)),            # fc_0 bias (8 sublanes)
        pl.BlockSpec((h_p, size_out), lambda i: (0, 0)),     # fc_1 weight^T (resident)
        pl.BlockSpec((8, size_out), lambda i: (0, 0)),       # fc_1 bias (8 sublanes)
    ]
    args = [x, w0, b0, w1, b1]

    if ws is not None:
        in_specs.append(pl.BlockSpec((size_in, size_out), lambda i: (0, 0)))
        args.append(ws)
        kernel = _resnet_block_kernel_shortcut
    else:
        kernel = _resnet_block_kernel_identity

    out_dtype = x.dtype

    # --- VMEM budget: only override the default scoped limit if needed ------
    w_bytes = sum(int(a.size) * a.dtype.itemsize for a in args[1:])
    est = (2 * tm_eff * size_in * x.dtype.itemsize            # x (double-buffered)
           + 2 * tm_eff * size_out * jnp.dtype(out_dtype).itemsize  # out (dbl-buf)
           + 2 * w_bytes                                      # weights/biases
           + 6 * tm_eff * max(size_in, h_p, size_out) * 4)    # f32 temporaries
    vmem_limit = None
    if est > 14 * 1024 * 1024:
        vmem_limit = int(min(64 * 1024 * 1024, 2 * est))

    out = pl.pallas_call(
        kernel,
        out_shape=jax.ShapeDtypeStruct((N, size_out), out_dtype),
        grid_spec=pltpu.PrefetchScalarGridSpec(
            num_scalar_prefetch=0,
            grid=grid,
            in_specs=in_specs,
            out_specs=pl.BlockSpec((tm_eff, size_out), lambda i: (i, 0)),
        ),
        compiler_params=pltpu.CompilerParams(
            dimension_semantics=("parallel",),
            vmem_limit_bytes=vmem_limit,
        ),
    )(*args)
    return out


# -------------------------- parameter packing / init -------------------------


def make_resnet_block_params(w0, b0, w1, b1, ws=None, *,
                             weight_dtype=jnp.bfloat16, lane=128):
    """Pack PyTorch-layout parameters ONCE into the kernel layout.

    w0: (size_h, size_in), b0: (size_h,), w1: (size_out, size_h),
    b1: (size_out,), ws: (size_out, size_in) or None.
    Hidden dim is zero-padded to a multiple of `lane` (numerically inert),
    weights are cast to `weight_dtype`, biases stay f32 on 8 sublanes.
    """
    size_h, size_in = w0.shape
    size_out = w1.shape[0]
    h_p = _round_up(size_h, lane)

    w0_t = _pad_to(jnp.asarray(w0, jnp.float32).T, (size_in, h_p)).astype(weight_dtype)
    w1_t = _pad_to(jnp.asarray(w1, jnp.float32).T, (h_p, size_out)).astype(weight_dtype)
    b0_p = jnp.tile(_pad_to(jnp.asarray(b0, jnp.float32).reshape(1, -1), (1, h_p)), (8, 1))
    b1_p = jnp.tile(jnp.asarray(b1, jnp.float32).reshape(1, -1), (8, 1))

    params = {"w0": w0_t, "b0": b0_p, "w1": w1_t, "b1": b1_p}
    if ws is not None:
        params["ws"] = jnp.asarray(ws, jnp.float32).T.astype(weight_dtype)
    return params


def init_resnet_block_fc(key, size_in, size_out=None, size_h=None, *,
                         weight_dtype=jnp.bfloat16):
    """Deterministic init matching the PyTorch __init__ (beta=0 -> ReLU)."""
    if size_out is None:
        size_out = size_in
    if size_h is None:
        size_h = min(size_in, size_out)

    k0, ks = jax.random.split(key, 2)

    # fc_0.weight: kaiming_normal_(a=0, mode='fan_in') -> std = sqrt(2 / fan_in)
    std0 = (2.0 / size_in) ** 0.5
    w0 = std0 * jax.random.normal(k0, (size_h, size_in), dtype=jnp.float32)
    b0 = jnp.zeros((size_h,), jnp.float32)

    # fc_1.weight: zeros, bias: zeros
    w1 = jnp.zeros((size_out, size_h), jnp.float32)
    b1 = jnp.zeros((size_out,), jnp.float32)

    ws = None
    if size_in != size_out:
        stds = (2.0 / size_in) ** 0.5
        ws = stds * jax.random.normal(ks, (size_out, size_in), dtype=jnp.float32)

    return make_resnet_block_params(w0, b0, w1, b1, ws, weight_dtype=weight_dtype)


# --------------------------------- reference ---------------------------------


def resnet_block_fc_ref(x, params):
    """Pure-JAX f32 reference mirroring the PyTorch forward (same stored weights)."""
    w0 = params["w0"].astype(jnp.float32)
    b0 = params["b0"][0].astype(jnp.float32)
    w1 = params["w1"].astype(jnp.float32)
    b1 = params["b1"][0].astype(jnp.float32)
    xf = x.astype(jnp.float32)
    h = jnp.maximum(xf, 0.0)
    net = h @ w0 + b0
    h2 = jnp.maximum(net, 0.0)
    dx = h2 @ w1 + b1
    if params.get("ws", None) is not None:
        x_s = xf @ params["ws"].astype(jnp.float32)
    else:
        x_s = xf
    return (x_s + dx).astype(x.dtype)


# ----------------------------------- driver ----------------------------------


if __name__ == "__main__":
    key = jax.random.PRNGKey(0)
    k_x1, k_x2, k_p1, kw0, kb0, kw1, kb1 = jax.random.split(key, 7)

    # Case 1: size_in != size_out -> linear shortcut path, PyTorch init,
    # bf16 weights (small batch, grid of 1).
    N1, size_in1, size_out1, size_h1 = 16, 32, 64, 32
    x1 = jax.random.normal(k_x1, (N1, size_in1), dtype=jnp.float32)
    params1 = init_resnet_block_fc(k_p1, size_in1, size_out1, size_h1)
    out1 = resnet_block_fc_pallas(x1, params1)
    jax.block_until_ready(out1)
    ref1 = resnet_block_fc_ref(x1, params1)
    assert out1.shape == (N1, size_out1)
    assert jnp.allclose(out1, ref1, atol=5e-2, rtol=5e-2)

    # Case 2: identity shortcut, ragged batch (N=203 -> 2 grid steps), random
    # non-zero weights so both matmuls are exercised, bf16 weights, hidden dim
    # 40 -> padded to 128 inside the packed params.
    N2, size_in2, size_h2 = 203, 48, 40
    x2 = jax.random.normal(k_x2, (N2, size_in2), dtype=jnp.float32)
    w0r = 0.2 * jax.random.normal(kw0, (size_h2, size_in2), dtype=jnp.float32)
    b0r = 0.1 * jax.random.normal(kb0, (size_h2,), dtype=jnp.float32)
    w1r = 0.2 * jax.random.normal(kw1, (size_in2, size_h2), dtype=jnp.float32)
    b1r = 0.1 * jax.random.normal(kb1, (size_in2,), dtype=jnp.float32)
    params2 = make_resnet_block_params(w0r, b0r, w1r, b1r, None,
                                       weight_dtype=jnp.bfloat16)
    out2 = resnet_block_fc_pallas(x2, params2)
    jax.block_until_ready(out2)
    ref2 = resnet_block_fc_ref(x2, params2)
    assert out2.shape == (N2, size_in2)
    assert jnp.allclose(out2, ref2, atol=5e-2, rtol=5e-2)

    # Case 3: same as case 2 but f32 weights -> tight numerical check of the
    # fused kernel structure (no bf16 operand rounding).
    params3 = make_resnet_block_params(w0r, b0r, w1r, b1r, None,
                                       weight_dtype=jnp.float32)
    out3 = resnet_block_fc_pallas(x2, params3)
    jax.block_until_ready(out3)
    ref3 = resnet_block_fc_ref(x2, params3)
    assert jnp.allclose(out3, ref3, atol=1e-5, rtol=1e-5)

    print("KERNEL_OK")
</pallas_src>

<mosaic_0001>
module attributes {stable_mosaic.version = 11 : i64} {
  func.func @_resnet_block_kernel_shortcut(%arg0: i32, %arg1: memref<16x32xf32, #tpu.memory_space<vmem>>, %arg2: memref<32x128xbf16, #tpu.memory_space<vmem>>, %arg3: memref<8x128xf32, #tpu.memory_space<vmem>>, %arg4: memref<128x64xbf16, #tpu.memory_space<vmem>>, %arg5: memref<8x64xf32, #tpu.memory_space<vmem>>, %arg6: memref<32x64xbf16, #tpu.memory_space<vmem>>, %arg7: memref<16x64xf32, #tpu.memory_space<vmem>>) attributes {dimension_semantics = [#tpu.dimension_semantics<parallel>], iteration_bounds = array<i64: 1>, scalar_prefetch = 0 : i64, scratch_operands = 0 : i64, tpu.core_type = #tpu.core_type<tc>, window_params = [{transform_indices = @transform_0, window_bounds = array<i64: 16, 32>}, {pipeline_mode = #tpu.pipeline_mode<synchronous>, transform_indices = @transform_1, window_bounds = array<i64: 32, 128>}, {pipeline_mode = #tpu.pipeline_mode<synchronous>, transform_indices = @transform_2, window_bounds = array<i64: 8, 128>}, {pipeline_mode = #tpu.pipeline_mode<synchronous>, transform_indices = @transform_3, window_bounds = array<i64: 128, 64>}, {pipeline_mode = #tpu.pipeline_mode<synchronous>, transform_indices = @transform_4, window_bounds = array<i64: 8, 64>}, {pipeline_mode = #tpu.pipeline_mode<synchronous>, transform_indices = @transform_5, window_bounds = array<i64: 32, 64>}, {transform_indices = @transform_6, window_bounds = array<i64: 16, 64>}]} {
    %c0 = arith.constant 0 : index
    %c0_0 = arith.constant 0 : index
    %0 = vector.load %arg1[%c0, %c0_0] : memref<16x32xf32, #tpu.memory_space<vmem>>, vector<16x32xf32>
    %cst = arith.constant 0.000000e+00 : f32
    %1 = vector.broadcast %cst : f32 to vector<16x32xf32>
    %2 = arith.maximumf %0, %1 : vector<16x32xf32>
    %3 = arith.truncf %2 : vector<16x32xf32> to vector<16x32xbf16>
    %c0_1 = arith.constant 0 : index
    %c0_2 = arith.constant 0 : index
    %4 = vector.load %arg2[%c0_1, %c0_2] : memref<32x128xbf16, #tpu.memory_space<vmem>>, vector<32x128xbf16>
    %cst_3 = arith.constant dense<0.000000e+00> : vector<16x128xf32>
    %5 = tpu.matmul %3, %4, %cst_3 {dimension_numbers = #tpu.dot_dimension_numbers<[1], [0], [0], [1], [0, 0, 1, 1], [], []>} : vector<16x32xbf16>, vector<32x128xbf16>, vector<16x128xf32> -> vector<16x128xf32>
    %c0_4 = arith.constant 0 : index
    %c0_5 = arith.constant 0 : index
    %6 = vector.load %arg3[%c0_4, %c0_5] : memref<8x128xf32, #tpu.memory_space<vmem>>, vector<1x128xf32>
    %7 = vector.broadcast %6 : vector<1x128xf32> to vector<16x128xf32>
    %8 = arith.addf %5, %7 : vector<16x128xf32>
    %cst_6 = arith.constant 0.000000e+00 : f32
    %9 = vector.broadcast %cst_6 : f32 to vector<16x128xf32>
    %10 = arith.maximumf %8, %9 : vector<16x128xf32>
    %11 = arith.truncf %10 : vector<16x128xf32> to vector<16x128xbf16>
    %c0_7 = arith.constant 0 : index
    %c0_8 = arith.constant 0 : index
    %12 = vector.load %arg4[%c0_7, %c0_8] : memref<128x64xbf16, #tpu.memory_space<vmem>>, vector<128x64xbf16>
    %cst_9 = arith.constant dense<0.000000e+00> : vector<16x64xf32>
    %13 = tpu.matmul %11, %12, %cst_9 {dimension_numbers = #tpu.dot_dimension_numbers<[1], [0], [0], [1], [0, 0, 1, 1], [], []>} : vector<16x128xbf16>, vector<128x64xbf16>, vector<16x64xf32> -> vector<16x64xf32>
    %c0_10 = arith.constant 0 : index
    %c0_11 = arith.constant 0 : index
    %14 = vector.load %arg5[%c0_10, %c0_11] : memref<8x64xf32, #tpu.memory_space<vmem>>, vector<1x64xf32>
    %15 = vector.broadcast %14 : vector<1x64xf32> to vector<16x64xf32>
    %16 = arith.addf %13, %15 : vector<16x64xf32>
    %17 = arith.truncf %0 : vector<16x32xf32> to vector<16x32xbf16>
    %c0_12 = arith.constant 0 : index
    %c0_13 = arith.constant 0 : index
    %18 = vector.load %arg6[%c0_12, %c0_13] : memref<32x64xbf16, #tpu.memory_space<vmem>>, vector<32x64xbf16>
    %cst_14 = arith.constant dense<0.000000e+00> : vector<16x64xf32>
    %19 = tpu.matmul %17, %18, %cst_14 {dimension_numbers = #tpu.dot_dimension_numbers<[1], [0], [0], [1], [0, 0, 1, 1], [], []>} : vector<16x32xbf16>, vector<32x64xbf16>, vector<16x64xf32> -> vector<16x64xf32>
    %20 = arith.addf %19, %16 : vector<16x64xf32>
    %c0_15 = arith.constant 0 : index
    %c0_16 = arith.constant 0 : index
    %21 = vector.load %arg7[%c0_15, %c0_16] : memref<16x64xf32, #tpu.memory_space<vmem>>, vector<16x64xf32>
    tpu.vector_store %arg7[%c0_15, %c0_16], %20 {strides = array<i32>} : memref<16x64xf32, #tpu.memory_space<vmem>>, vector<16x64xf32>,
    return
  }
  func.func @transform_0(%arg0: i32) -> (i32, i32) {
    %c0_i32 = arith.constant 0 : i32
    %c0_i32_0 = arith.constant 0 : i32
    return %arg0, %c0_i32 : i32, i32
  }
  func.func @transform_1(%arg0: i32) -> (i32, i32) {
    %c0_i32 = arith.constant 0 : i32
    %c0_i32_0 = arith.constant 0 : i32
    %c0_i32_1 = arith.constant 0 : i32
    return %c0_i32, %c0_i32_0 : i32, i32
  }
  func.func @transform_2(%arg0: i32) -> (i32, i32) {
    %c0_i32 = arith.constant 0 : i32
    %c0_i32_0 = arith.constant 0 : i32
    %c0_i32_1 = arith.constant 0 : i32
    return %c0_i32, %c0_i32_0 : i32, i32
  }
  func.func @transform_3(%arg0: i32) -> (i32, i32) {
    %c0_i32 = arith.constant 0 : i32
    %c0_i32_0 = arith.constant 0 : i32
    %c0_i32_1 = arith.constant 0 : i32
    return %c0_i32, %c0_i32_0 : i32, i32
  }
  func.func @transform_4(%arg0: i32) -> (i32, i32) {
    %c0_i32 = arith.constant 0 : i32
    %c0_i32_0 = arith.constant 0 : i32
    %c0_i32_1 = arith.constant 0 : i32
    return %c0_i32, %c0_i32_0 : i32, i32
  }
  func.func @transform_5(%arg0: i32) -> (i32, i32) {
    %c0_i32 = arith.constant 0 : i32
    %c0_i32_0 = arith.constant 0 : i32
    %c0_i32_1 = arith.constant 0 : i32
    return %c0_i32, %c0_i32_0 : i32, i32
  }
  func.func @transform_6(%arg0: i32) -> (i32, i32) {
    %c0_i32 = arith.constant 0 : i32
    %c0_i32_0 = arith.constant 0 : i32
    return %arg0, %c0_i32 : i32, i32
  }
}

</mosaic_0001>

<llo_original>
// kernel: tpu_custom_call.1
$region0: #{tpu_custom_call.1}
  #allocation0 [shape = 'u32[]', space=smem, size = 0x4, offset = 0x4, fixed_abs, tag = 'smem constant byte address 0x4 - core index']
  #allocation1 [shape = 'u32[72,128]{1,0:T(1,128)}', space=vmem, size = 0x9000, scoped, tag = 'internal scratch']
  %s0 = inlined_call_operand.vmem [shape: f32[16,32], index: 0, kind: input, shape index: {}]
  %s1 = inlined_call_operand.vmem [shape: bf16[32,128], index: 1, kind: input, shape index: {}]
  %s2 = inlined_call_operand.vmem [shape: f32[8,128], index: 2, kind: input, shape index: {}]
  %s3 = inlined_call_operand.vmem [shape: bf16[128,64], index: 3, kind: input, shape index: {}]
  %s4 = inlined_call_operand.vmem [shape: f32[8,64], index: 4, kind: input, shape index: {}]
  %s5 = inlined_call_operand.vmem [shape: bf16[32,64], index: 5, kind: input, shape index: {}]
  %s6 = inlined_call_operand.hbm [shape: f32[16,64], index: 6, kind: output, shape index: {}]
  %s7 = sld [smem:[#allocation0]]
  $region34: #{tpu_custom_call.1} parent=0
    _
  %s9 = ssub.s32 1, %s7
  %s10 = scalar_select 0, %s9, %s7
  $region1: #{tpu_custom_call.1} parent=0
    #allocation2 [shape = 'u8[8192]{0}', space=vmem, size = 0x2000, scoped, tag = 'output window, operand 0, single buffered']
    #allocation3 [shape = 's32[1]{0}', space=sflag, size = 0x4, scoped, tag = 'scoped memory for tpu_custom_call.1']
    %11 = vsyncpa [#allocation3], 0
    // Predicated region
    $region2: #{tpu_custom_call.1} parent=1 // pred_check
      _
    $region3: #{tpu_custom_call.1} parent=1 // pred_check_branch
      %13 = sbr.rel (0) target = $region5
    $region4: #{tpu_custom_call.1} parent=1 // pred_region
      _
    $region5: #{tpu_custom_call.1} parent=1 // pred_fallthru
      _
    // Predicated region
    $region6: #{tpu_custom_call.1} parent=1 // pred_check
      _
    $region7: #{tpu_custom_call.1} parent=1 // pred_check_branch
      %15 = sbr.rel (0) target = $region9
    $region8: #{tpu_custom_call.1} parent=1 // pred_region
      _
    $region9: #{tpu_custom_call.1} parent=1 // pred_fallthru
      _
    // Predicated region
    $region10: #{tpu_custom_call.1} parent=1 // pred_check
      _
    $region11: #{tpu_custom_call.1} parent=1 // pred_check_branch
      %17 = sbr.rel (0) target = $region13
    $region12: #{tpu_custom_call.1} parent=1 // pred_region
      _
    $region13: #{tpu_custom_call.1} parent=1 // pred_fallthru
      _
    // Predicated region
    $region14: #{tpu_custom_call.1} parent=1 // pred_check
      _
    $region15: #{tpu_custom_call.1} parent=1 // pred_check_branch
      %19 = sbr.rel (0) target = $region17
    $region16: #{tpu_custom_call.1} parent=1 // pred_region
      _
    $region17: #{tpu_custom_call.1} parent=1 // pred_fallthru
      _
    // Predicated region
    $region18: #{tpu_custom_call.1} parent=1 // pred_check
      _
    $region19: #{tpu_custom_call.1} parent=1 // pred_check_branch
      %21 = sbr.rel (0) target = $region21
    $region20: #{tpu_custom_call.1} parent=1 // pred_region
      _
    $region21: #{tpu_custom_call.1} parent=1 // pred_fallthru
      _
    // Predicated region
    $region22: #{tpu_custom_call.1} parent=1 // pred_check
      _
    $region23: #{tpu_custom_call.1} parent=1 // pred_check_branch
      %23 = sbr.rel (0) target = $region25
    $region24: #{tpu_custom_call.1} parent=1 // pred_region
      _
    $region25: #{tpu_custom_call.1} parent=1 // pred_fallthru
      _
    %v25 = vld [vmem:[%s0] sm:$0xff]
    %v26 = vld [vmem:[%s0 + $0x8] sm:$0xff]
    %v27 = vmax.f32 %v25, 0.0
    %v28 = vmax.f32 %v26, 0.0
    %v29 = vpack.c.bf16 %v28, %v27
    %v30 = vld [vmem:[%s1] sm:$0xf]
    %v31 = vld [vmem:[%s1 + $0x4] sm:$0xf]
    %v32 = vld [vmem:[%s1 + $0x8] sm:$0xf]
    %v33 = vld [vmem:[%s1 + $0xc] sm:$0xf]
    %v34 = vld [vmem:[%s2] sm:$0x1]
    %v35 = vperm.slane %v34, 0
    %v40 = vunpack.c.l.b16 %v30
    %v41 = vunpack.c.l.b16 %v31
    %v42 = vunpack.c.l.b16 %v32
    %v43 = vunpack.c.l.b16 %v33
    %v44 = vpack.c.b16 %v41, %v40
    %v45 = vpack.c.b16 %v43, %v42
    %vm48 = vcmask 261120
    %v50 = vsel %vm48, %v29, 0
    %52 = vmatpush.bf16.msra.mxu0 0
    %53 = vmatpush.bf16.msra.mxu0 0
    %54 = vmatpush.bf16.msra.mxu0 0
    %55 = vmatpush.bf16.msra.mxu0 0
    %56 = vmatpush.bf16.msra.mxu0 0
    %57 = vmatpush.bf16.msra.mxu0 0
    %58 = vmatpush.bf16.msra.mxu0 %v45
    %59 = vmatpush.bf16.msra.mxu0 %v44
    %60 = vmatmul.bf16.gmra.mxu0 %v50
    %v61 = vpop.f32.mrf.mxu0
    %v62 = vadd.f32 %v35, %v61
    %v63 = vpop.f32.mrf.mxu0
    %v64 = vadd.f32 %v35, %v63
    %65 = vdwg.mxu0
    %v66 = vmax.f32 %v62, 0.0
    %v67 = vmax.f32 %v64, 0.0
    %v68 = vpack.c.bf16 %v67, %v66
    %v69 = vld [vmem:[%s3] sm:$0xf]
    %v70 = vld [vmem:[%s3 + $0x4] sm:$0xf]
    %v71 = vld [vmem:[%s3 + $0x8] sm:$0xf]
    %v72 = vld [vmem:[%s3 + $0xc] sm:$0xf]
    %v73 = vld [vmem:[%s3 + $0x10] sm:$0xf]
    %v74 = vld [vmem:[%s3 + $0x14] sm:$0xf]
    %v75 = vld [vmem:[%s3 + $0x18] sm:$0xf]
    %v76 = vld [vmem:[%s3 + $0x1c] sm:$0xf]
    %v77 = vld [vmem:[%s3 + $0x20] sm:$0xf]
    %v78 = vld [vmem:[%s3 + $0x24] sm:$0xf]
    %v79 = vld [vmem:[%s3 + $0x28] sm:$0xf]
    %v80 = vld [vmem:[%s3 + $0x2c] sm:$0xf]
    %v81 = vld [vmem:[%s3 + $0x30] sm:$0xf]
    %v82 = vld [vmem:[%s3 + $0x34] sm:$0xf]
    %v83 = vld [vmem:[%s3 + $0x38] sm:$0xf]
    %v84 = vld [vmem:[%s3 + $0x3c] sm:$0xf]
    %v85 = vld [vmem:[%s4] sm:$0x1]
    %v86 = vperm.slane %v85, 0
    %v103 = vunpack.c.l.b16 %v69
    %v104 = vunpack.c.l.b16 %v70
    %v105 = vunpack.c.l.b16 %v71
    %v106 = vunpack.c.l.b16 %v72
    %v107 = vunpack.c.l.b16 %v73
    %v108 = vunpack.c.l.b16 %v74
    %v109 = vunpack.c.l.b16 %v75
    %v110 = vunpack.c.l.b16 %v76
    %v111 = vunpack.c.l.b16 %v77
    %v112 = vunpack.c.l.b16 %v78
    %v113 = vunpack.c.l.b16 %v79
    %v114 = vunpack.c.l.b16 %v80
    %v115 = vunpack.c.l.b16 %v81
    %v116 = vunpack.c.l.b16 %v82
    %v117 = vunpack.c.l.b16 %v83
    %v118 = vunpack.c.l.b16 %v84
    %v119 = vpack.c.b16 %v104, %v103
    %v120 = vpack.c.b16 %v106, %v105
    %v121 = vpack.c.b16 %v108, %v107
    %v122 = vpack.c.b16 %v110, %v109
    %v123 = vpack.c.b16 %v112, %v111
    %v124 = vpack.c.b16 %v114, %v113
    %v125 = vpack.c.b16 %v116, %v115
    %v126 = vpack.c.b16 %v118, %v117
    %135 = vmatpush.bf16.msra.mxu0 %v126
    %136 = vmatpush.bf16.msra.mxu0 %v125
    %137 = vmatpush.bf16.msra.mxu0 %v124
    %138 = vmatpush.bf16.msra.mxu0 %v123
    %139 = vmatpush.bf16.msra.mxu0 %v122
    %140 = vmatpush.bf16.msra.mxu0 %v121
    %141 = vmatpush.bf16.msra.mxu0 %v120
    %142 = vmatpush.bf16.msra.mxu0 %v119
    %143 = vmatmul.bf16.gmra.mxu0 %v68
    %v144 = vpop.f32.mrf.mxu0
    %v145 = vadd.f32 %v86, %v144
    %v146 = vpop.f32.mrf.mxu0
    %v147 = vadd.f32 %v86, %v146
    %148 = vdwg.mxu0
    %v149 = vpack.c.bf16 %v26, %v25
    %v150 = vld [vmem:[%s5] sm:$0xf]
    %v151 = vld [vmem:[%s5 + $0x4] sm:$0xf]
    %v152 = vld [vmem:[%s5 + $0x8] sm:$0xf]
    %v153 = vld [vmem:[%s5 + $0xc] sm:$0xf]
    %v158 = vunpack.c.l.b16 %v150
    %v159 = vunpack.c.l.b16 %v151
    %v160 = vunpack.c.l.b16 %v152
    %v161 = vunpack.c.l.b16 %v153
    %v162 = vpack.c.b16 %v159, %v158
    %v163 = vpack.c.b16 %v161, %v160
    %v167 = vsel %vm48, %v149, 0
    %169 = vmatpush.bf16.msra.mxu0 0
    %170 = vmatpush.bf16.msra.mxu0 0
    %171 = vmatpush.bf16.msra.mxu0 0
    %172 = vmatpush.bf16.msra.mxu0 0
    %173 = vmatpush.bf16.msra.mxu0 0
    %174 = vmatpush.bf16.msra.mxu0 0
    %175 = vmatpush.bf16.msra.mxu0 %v163
    %176 = vmatpush.bf16.msra.mxu0 %v162
    %177 = vmatmul.bf16.gmra.mxu0 %v167
    %v178 = vpop.f32.mrf.mxu0
    %v179 = vadd.f32 %v145, %v178
    %v180 = vpop.f32.mrf.mxu0
    %v181 = vadd.f32 %v147, %v180
    %182 = vdwg.mxu0
    %vm183 = vcmask 523264
    %184 = vst.msk [vmem:[#allocation2] sm:$0xff] %vm183, %v179
    %185 = vst.msk [vmem:[#allocation2 + $0x8] sm:$0xff] %vm183, %v181
    // Predicated region
    $region26: #{tpu_custom_call.1} parent=1 // pred_check
      _
    $region27: #{tpu_custom_call.1} parent=1 // pred_check_branch
      %187 = sbr.rel (0) target = $region29
    $region28: #{tpu_custom_call.1} parent=1 // pred_region
      %189 = vsyncadd [#allocation3], 0
      %s190 = sshll.u32 [#allocation2], 4
      %s191 = int_to_ptr.vmem [resolvable:$true] %s190
      %s192 = sshll.u32 %s6, 4
      %s193 = int_to_ptr.hbm [resolvable:$true] %s192
      %198 = dma.vmem_to_hbm [thread:$0]  %s191, 256, %s193, [#allocation3], 128, 128, 8
    $region29: #{tpu_custom_call.1} parent=1 // pred_fallthru
      _
    // Predicated region
    $region30: #{tpu_custom_call.1} parent=1 // pred_check
      _
    $region31: #{tpu_custom_call.1} parent=1 // pred_check_branch
      %200 = sbr.rel (0) target = $region33
    $region32: #{tpu_custom_call.1} parent=1 // pred_region
      %202 = dma.done [#allocation3], 256
    $region33: #{tpu_custom_call.1} parent=1 // pred_fallthru
      _
    %203 = vsyncpa [#allocation3], 1

</llo_original>
